<compile_context>
chip_gen: v5e
topology: v5e:2x2
jax: 0.10.0
libtpu: 0.0.40
codegen_flags: <defaults>
</compile_context>

<pallas_src>
import functools

import jax
import jax.numpy as jnp
from jax.experimental import pallas as pl
from jax.experimental.pallas import tpu as pltpu


_HALF_LOG_2PI = 0.9189385332046727


# ----------------------------- kernel math -----------------------------------

def _softplus(x):
    # numerically-stable softplus with ops that lower cleanly on Mosaic
    return jnp.maximum(x, 0.0) + jnp.log(1.0 + jnp.exp(-jnp.abs(x)))


def _gamma_one_plus(u):
    """Gamma(1 + u) for u in (0, 10]  (u = 1/kappa, kappa >= 0.1).

    Shifted Stirling series (torch.lgamma has no direct Mosaic lowering):
        Gamma(1+u) = Gamma(7+u) / [(1+u)(2+u)(3+u)(4+u)(5+u)(6+u)]
        lgamma(w) ~= (w-1/2)ln(w) - w + ln(2*pi)/2 + 1/(12w) - 1/(360w^3)
                     + 1/(1260w^5),   with w = 7+u >= 7  (series error < 1e-9)
    Far shorter EUP-serial chain than a Lanczos expansion; the pochhammer
    product is pure VPU multiplies.
    """
    z = 1.0 + u                                   # in (1, 11]
    w = z + 6.0                                   # in (7, 17]
    p = z * (z + 1.0) * (z + 2.0) * (z + 3.0) * (z + 4.0) * (z + 5.0)
    inv_w = pl.reciprocal(w, approx=True)         # only feeds tiny correction terms
    inv_w2 = inv_w * inv_w
    series = inv_w * (1.0 / 12.0 - inv_w2 * (1.0 / 360.0 - inv_w2 * (1.0 / 1260.0)))
    lg_w = (w - 0.5) * jnp.log(w) - w + _HALF_LOG_2PI + series
    return jnp.exp(lg_w) * pl.reciprocal(p, approx=False)


# ----------------------------- fused kernel ----------------------------------

def _fused_infnet_kernel(c, out_cols, *refs):
    """Whole eval-mode InfNet forward in one kernel invocation.

    refs = (a_ref, x_ref, w_0, ..., w_{L-1}, out_ref); w_{L-1} is the
    lane-dense padded last weight (F_in, out_pad).
    """
    a_ref, x_ref = refs[0], refs[1]
    w_refs = refs[2:-1]
    out_ref = refs[-1]

    a = a_ref[...]                     # (N, N) f32 symmetric-normalized adjacency
    h = x_ref[...]                     # (N, F_in) f32
    # TODO(synk): F.dropout between layers skipped (identity in eval mode);
    # random-encoder Weibull sampling branch not used in eval.
    for w_ref in w_refs:
        # GCNConv (no bias): softplus( A_hat @ (h @ W) ), f32 MXU accumulate.
        xw = jnp.dot(h, w_ref[...], preferred_element_type=jnp.float32)
        h = _softplus(jnp.dot(a, xw, preferred_element_type=jnp.float32))

    # After the last (lane-padded) layer, h is (N, out_pad) with:
    #   lanes [0, c-1)     : lbd  (duplicate copy -> scaled into z below)
    #   lanes [c-1, 2c-2)  : lbd
    #   lane  2c-2         : raw kappa      (kappa = raw + 0.1)
    #   lanes [2c-1, ...)  : softplus(0)    (zeroed below)
    kcol = 2 * (c - 1)
    kappa = h[:, kcol:kcol + 1] + 0.1                       # (N, 1)
    inv_kappa = pl.reciprocal(kappa, approx=False)          # exact: Gamma argument
    g = _gamma_one_plus(inv_kappa)                          # exp(lgamma(1 + 1/kappa))

    lane = jax.lax.broadcasted_iota(jnp.int32, h.shape, 1)
    slab = jnp.where(lane < c - 1, h * g, h)                # z = lbd * Gamma(1+1/kappa)
    slab = jnp.where(lane == kcol, h + 0.1, slab)           # kappa column
    slab = jnp.where(lane >= out_cols, 0.0, slab)           # zero the lane padding
    out_ref[...] = slab                                     # one unmasked 128-lane store


# ------------------------------ glue ------------------------------------------

def build_norm_adj(edge_index, num_nodes):
    """Dense GCN-normalized adjacency: D^{-1/2}(A + I)D^{-1/2} (PyG GCNConv)."""
    a = jnp.zeros((num_nodes, num_nodes), jnp.float32)
    # PyG message passing aggregates source -> target: A[target, source] = 1
    a = a.at[edge_index[1], edge_index[0]].set(1.0)
    eye = jnp.eye(num_nodes, dtype=jnp.float32)
    # Force A[i,i] = 1 exactly once, even if edge_index has explicit self-loops
    a = a * (1.0 - eye) + eye
    deg = a.sum(axis=1)
    d_inv_sqrt = 1.0 / jnp.sqrt(deg)                  # deg >= 1 (self-loop)
    return a * d_inv_sqrt[:, None] * d_inv_sqrt[None, :]


def prepare_infnet_params(weights):
    """One-time setup: re-lay-out the last GCN weight into a lane-dense
    (F_in, out_pad) layout [ lbd-dup | lbd | kappa | 0 ] so the kernel's output
    needs no cross-lane shuffles.  Returns (prepared_weights, c, out_cols, out_pad)."""
    w_last = weights[-1]
    f_in, c = w_last.shape
    out_cols = 2 * (c - 1) + 1                          # z | lbd | kappa
    out_pad = max(128, ((out_cols + 127) // 128) * 128)
    w_pad = jnp.zeros((f_in, out_pad), w_last.dtype)
    w_pad = w_pad.at[:, 0:c - 1].set(w_last[:, :c - 1])            # -> z lanes
    w_pad = w_pad.at[:, c - 1:2 * (c - 1)].set(w_last[:, :c - 1])  # -> lbd lanes
    w_pad = w_pad.at[:, 2 * (c - 1)].set(w_last[:, c - 1])         # -> kappa lane
    return list(weights[:-1]) + [w_pad], c, out_cols, out_pad


def infnet_forward(x, a_hat, prepared_weights, c, out_cols, out_pad):
    """Eval-mode InfNet.forward as one grid-less fused pallas_call.

    Returns the lane-dense (N, out_pad) f32 slab [ z | lbd | kappa | 0 ];
    consumers slice it themselves (ideally inside their own kernel)."""
    n = x.shape[0]

    # advisory cost estimate so XLA schedules around this tiny custom call
    flops, trans, bytes_accessed = 0, 0, 0
    for w in prepared_weights:
        fi, fo = w.shape
        flops += 2 * n * fi * fo + 2 * n * n * fo       # h @ W and A_hat @ (hW)
        trans += 2 * n * fo                             # softplus: exp + log
        bytes_accessed += 4 * fi * fo
    trans += 8 * n                                      # reparam: log/exp/recips
    flops += 12 * n * out_pad                           # output assembly selects
    bytes_accessed += 4 * (n * n + n * x.shape[1] + n * out_pad)

    kernel = functools.partial(_fused_infnet_kernel, c, out_cols)
    vmem_spec = pl.BlockSpec(memory_space=pltpu.MemorySpace.VMEM)

    slab = pl.pallas_call(
        kernel,
        out_shape=jax.ShapeDtypeStruct((n, out_pad), jnp.float32),
        in_specs=[vmem_spec] * (2 + len(prepared_weights)),
        out_specs=vmem_spec,
        cost_estimate=pl.CostEstimate(flops=flops, transcendentals=trans,
                                      bytes_accessed=bytes_accessed),
    )(a_hat, x, *prepared_weights)
    return slab


def split_slab(slab, c):
    """Consumer-side split of the slab into (z, lbd, kappa)."""
    z = slab[:, :c - 1]
    lbd = slab[:, c - 1:2 * (c - 1)]
    kappa = slab[:, 2 * (c - 1):2 * (c - 1) + 1]
    return z, lbd, kappa


def _reference_forward(x, a_hat, weights):
    """Pure-JAX eval-mode reference (highest-precision dots, scipy lgamma)."""
    h = x
    for w in weights:
        xw = jnp.dot(h, w, precision=jax.lax.Precision.HIGHEST)
        h = jax.nn.softplus(jnp.dot(a_hat, xw, precision=jax.lax.Precision.HIGHEST))
    lbd, kappa_raw = h[:, :-1], h[:, -1:]
    kappa = kappa_raw + 0.1
    z = lbd * jnp.exp(jax.scipy.special.gammaln(1.0 + 1.0 / kappa))
    return z, lbd, kappa


# ------------------------------ driver ----------------------------------------

if __name__ == "__main__":
    key = jax.random.PRNGKey(0)

    num_nodes = 16
    in_dim = 8
    hid_dims = (16, 8)
    dims = [in_dim] + list(hid_dims)
    dims[-1] = dims[-1] + 1          # last GCN layer emits hid_dims[-1] + 1

    keys = jax.random.split(key, 1 + len(dims) - 1)
    k_x, k_ws = keys[0], keys[1:]

    # deterministic synthetic parameters (GCNConv weight: (F_in, F_out), no bias)
    weights = [
        (jax.random.normal(kw, (fi, fo), jnp.float32) / jnp.sqrt(float(fi)))
        for kw, fi, fo in zip(k_ws, dims[:-1], dims[1:])
    ]

    # node features and a ring graph (edges in both directions), PyG-style (2, E)
    x = jax.random.normal(k_x, (num_nodes, in_dim), jnp.float32)
    src = jnp.arange(num_nodes)
    dst = (src + 1) % num_nodes
    edge_index = jnp.concatenate(
        [jnp.stack([src, dst]), jnp.stack([dst, src])], axis=1
    )
    a_hat = build_norm_adj(edge_index, num_nodes)

    # one-time parameter prep (lane-dense relayout of the last GCN weight)
    prepared_weights, c, out_cols, out_pad = prepare_infnet_params(weights)

    slab = infnet_forward(x, a_hat, prepared_weights, c, out_cols, out_pad)
    jax.block_until_ready(slab)

    z, lbd, kappa = split_slab(slab, c)   # consumer-side split (validation only)

    assert slab.shape == (num_nodes, out_pad)
    assert z.shape == (num_nodes, dims[-1] - 1)
    assert lbd.shape == (num_nodes, dims[-1] - 1)
    assert kappa.shape == (num_nodes, 1)
    assert bool(jnp.all(jnp.isfinite(slab)))
    assert bool(jnp.all(slab[:, out_cols:] == 0.0))

    z_ref, lbd_ref, kappa_ref = _reference_forward(x, a_hat, weights)
    assert bool(jnp.allclose(z, z_ref, rtol=5e-3, atol=5e-4))
    assert bool(jnp.allclose(lbd, lbd_ref, rtol=5e-3, atol=5e-4))
    assert bool(jnp.allclose(kappa, kappa_ref, rtol=5e-3, atol=5e-4))

    print("KERNEL_OK")
</pallas_src>

<mosaic_0001>
module attributes {stable_mosaic.version = 11 : i64} {
  func.func @_fused_infnet_kernel(%arg0: memref<16x16xf32, #tpu.memory_space<vmem>>, %arg1: memref<16x8xf32, #tpu.memory_space<vmem>>, %arg2: memref<8x16xf32, #tpu.memory_space<vmem>>, %arg3: memref<16x128xf32, #tpu.memory_space<vmem>>, %arg4: memref<16x128xf32, #tpu.memory_space<vmem>>) attributes {dimension_semantics = [], scalar_prefetch = 0 : i64, scratch_operands = 0 : i64, tpu.core_type = #tpu.core_type<tc>} {
    %c0 = arith.constant 0 : index
    %c0_0 = arith.constant 0 : index
    %0 = vector.load %arg0[%c0, %c0_0] : memref<16x16xf32, #tpu.memory_space<vmem>>, vector<16x16xf32>
    %c0_1 = arith.constant 0 : index
    %c0_2 = arith.constant 0 : index
    %1 = vector.load %arg1[%c0_1, %c0_2] : memref<16x8xf32, #tpu.memory_space<vmem>>, vector<16x8xf32>
    %c0_3 = arith.constant 0 : index
    %c0_4 = arith.constant 0 : index
    %2 = vector.load %arg2[%c0_3, %c0_4] : memref<8x16xf32, #tpu.memory_space<vmem>>, vector<8x16xf32>
    %cst = arith.constant dense<0.000000e+00> : vector<16x16xf32>
    %3 = tpu.matmul %1, %2, %cst {dimension_numbers = #tpu.dot_dimension_numbers<[1], [0], [0], [1], [0, 0, 1, 1], [], []>} : vector<16x8xf32>, vector<8x16xf32>, vector<16x16xf32> -> vector<16x16xf32>
    %cst_5 = arith.constant dense<0.000000e+00> : vector<16x16xf32>
    %4 = tpu.matmul %0, %3, %cst_5 {dimension_numbers = #tpu.dot_dimension_numbers<[1], [0], [0], [1], [0, 0, 1, 1], [], []>} : vector<16x16xf32>, vector<16x16xf32>, vector<16x16xf32> -> vector<16x16xf32>
    %cst_6 = arith.constant 0.000000e+00 : f32
    %5 = vector.broadcast %cst_6 : f32 to vector<16x16xf32>
    %6 = arith.maximumf %4, %5 : vector<16x16xf32>
    %7 = math.absf %4 : vector<16x16xf32>
    %cst_7 = arith.constant 0.000000e+00 : f32
    %8 = vector.broadcast %cst_7 : f32 to vector<16x16xf32>
    %9 = arith.subf %8, %7 : vector<16x16xf32>
    %10 = math.exp %9 : vector<16x16xf32>
    %cst_8 = arith.constant 1.000000e+00 : f32
    %11 = vector.broadcast %cst_8 : f32 to vector<16x16xf32>
    %12 = arith.addf %11, %10 : vector<16x16xf32>
    %13 = math.log %12 : vector<16x16xf32>
    %14 = arith.addf %6, %13 : vector<16x16xf32>
    %c0_9 = arith.constant 0 : index
    %c0_10 = arith.constant 0 : index
    %15 = vector.load %arg3[%c0_9, %c0_10] : memref<16x128xf32, #tpu.memory_space<vmem>>, vector<16x128xf32>
    %cst_11 = arith.constant dense<0.000000e+00> : vector<16x128xf32>
    %16 = tpu.matmul %14, %15, %cst_11 {dimension_numbers = #tpu.dot_dimension_numbers<[1], [0], [0], [1], [0, 0, 1, 1], [], []>} : vector<16x16xf32>, vector<16x128xf32>, vector<16x128xf32> -> vector<16x128xf32>
    %cst_12 = arith.constant dense<0.000000e+00> : vector<16x128xf32>
    %17 = tpu.matmul %0, %16, %cst_12 {dimension_numbers = #tpu.dot_dimension_numbers<[1], [0], [0], [1], [0, 0, 1, 1], [], []>} : vector<16x16xf32>, vector<16x128xf32>, vector<16x128xf32> -> vector<16x128xf32>
    %cst_13 = arith.constant 0.000000e+00 : f32
    %18 = vector.broadcast %cst_13 : f32 to vector<16x128xf32>
    %19 = arith.maximumf %17, %18 : vector<16x128xf32>
    %20 = math.absf %17 : vector<16x128xf32>
    %cst_14 = arith.constant 0.000000e+00 : f32
    %21 = vector.broadcast %cst_14 : f32 to vector<16x128xf32>
    %22 = arith.subf %21, %20 : vector<16x128xf32>
    %23 = math.exp %22 : vector<16x128xf32>
    %cst_15 = arith.constant 1.000000e+00 : f32
    %24 = vector.broadcast %cst_15 : f32 to vector<16x128xf32>
    %25 = arith.addf %24, %23 : vector<16x128xf32>
    %26 = math.log %25 : vector<16x128xf32>
    %27 = arith.addf %19, %26 : vector<16x128xf32>
    %28 = vector.extract_strided_slice %27 {offsets = [0, 16], sizes = [16, 1], strides = [1, 1]} : vector<16x128xf32> to vector<16x1xf32>
    %cst_16 = arith.constant 1.000000e-01 : f32
    %29 = vector.broadcast %cst_16 : f32 to vector<16x1xf32>
    %30 = arith.addf %28, %29 : vector<16x1xf32>
    %31 = tpu.reciprocal %30 : vector<16x1xf32> -> vector<16x1xf32>
    %cst_17 = arith.constant 1.000000e+00 : f32
    %32 = vector.broadcast %cst_17 : f32 to vector<16x1xf32>
    %33 = arith.addf %32, %31 : vector<16x1xf32>
    %cst_18 = arith.constant 6.000000e+00 : f32
    %34 = vector.broadcast %cst_18 : f32 to vector<16x1xf32>
    %35 = arith.addf %33, %34 : vector<16x1xf32>
    %cst_19 = arith.constant 1.000000e+00 : f32
    %36 = vector.broadcast %cst_19 : f32 to vector<16x1xf32>
    %37 = arith.addf %33, %36 : vector<16x1xf32>
    %38 = arith.mulf %33, %37 : vector<16x1xf32>
    %cst_20 = arith.constant 2.000000e+00 : f32
    %39 = vector.broadcast %cst_20 : f32 to vector<16x1xf32>
    %40 = arith.addf %33, %39 : vector<16x1xf32>
    %41 = arith.mulf %38, %40 : vector<16x1xf32>
    %cst_21 = arith.constant 3.000000e+00 : f32
    %42 = vector.broadcast %cst_21 : f32 to vector<16x1xf32>
    %43 = arith.addf %33, %42 : vector<16x1xf32>
    %44 = arith.mulf %41, %43 : vector<16x1xf32>
    %cst_22 = arith.constant 4.000000e+00 : f32
    %45 = vector.broadcast %cst_22 : f32 to vector<16x1xf32>
    %46 = arith.addf %33, %45 : vector<16x1xf32>
    %47 = arith.mulf %44, %46 : vector<16x1xf32>
    %cst_23 = arith.constant 5.000000e+00 : f32
    %48 = vector.broadcast %cst_23 : f32 to vector<16x1xf32>
    %49 = arith.addf %33, %48 : vector<16x1xf32>
    %50 = arith.mulf %47, %49 : vector<16x1xf32>
    %51 = tpu.reciprocal %35 {approx = true} : vector<16x1xf32> -> vector<16x1xf32>
    %52 = arith.mulf %51, %51 : vector<16x1xf32>
    %cst_24 = arith.constant 7.93650805E-4 : f32
    %53 = vector.broadcast %cst_24 : f32 to vector<16x1xf32>
    %54 = arith.mulf %52, %53 : vector<16x1xf32>
    %cst_25 = arith.constant 0.00277777785 : f32
    %55 = vector.broadcast %cst_25 : f32 to vector<16x1xf32>
    %56 = arith.subf %55, %54 : vector<16x1xf32>
    %57 = arith.mulf %52, %56 : vector<16x1xf32>
    %cst_26 = arith.constant 0.0833333358 : f32
    %58 = vector.broadcast %cst_26 : f32 to vector<16x1xf32>
    %59 = arith.subf %58, %57 : vector<16x1xf32>
    %60 = arith.mulf %51, %59 : vector<16x1xf32>
    %cst_27 = arith.constant 5.000000e-01 : f32
    %61 = vector.broadcast %cst_27 : f32 to vector<16x1xf32>
    %62 = arith.subf %35, %61 : vector<16x1xf32>
    %63 = math.log %35 : vector<16x1xf32>
    %64 = arith.mulf %62, %63 : vector<16x1xf32>
    %65 = arith.subf %64, %35 : vector<16x1xf32>
    %cst_28 = arith.constant 0.918938517 : f32
    %66 = vector.broadcast %cst_28 : f32 to vector<16x1xf32>
    %67 = arith.addf %65, %66 : vector<16x1xf32>
    %68 = arith.addf %67, %60 : vector<16x1xf32>
    %69 = math.exp %68 : vector<16x1xf32>
    %70 = tpu.reciprocal %50 : vector<16x1xf32> -> vector<16x1xf32>
    %71 = arith.mulf %69, %70 : vector<16x1xf32>
    %72 = tpu.iota {dimensions = array<i32: 1>} : vector<16x128xi32>
    %c8_i32 = arith.constant 8 : i32
    %73 = vector.broadcast %c8_i32 : i32 to vector<16x128xi32>
    %74 = arith.cmpi slt, %72, %73 : vector<16x128xi32>
    %75 = vector.broadcast %71 : vector<16x1xf32> to vector<16x128xf32>
    %76 = arith.mulf %27, %75 : vector<16x128xf32>
    %77 = arith.select %74, %76, %27 : vector<16x128xi1>, vector<16x128xf32>
    %c16_i32 = arith.constant 16 : i32
    %78 = vector.broadcast %c16_i32 : i32 to vector<16x128xi32>
    %79 = arith.cmpi eq, %72, %78 : vector<16x128xi32>
    %cst_29 = arith.constant 1.000000e-01 : f32
    %80 = vector.broadcast %cst_29 : f32 to vector<16x128xf32>
    %81 = arith.addf %27, %80 : vector<16x128xf32>
    %82 = arith.select %79, %81, %77 : vector<16x128xi1>, vector<16x128xf32>
    %c17_i32 = arith.constant 17 : i32
    %83 = vector.broadcast %c17_i32 : i32 to vector<16x128xi32>
    %84 = arith.cmpi sge, %72, %83 : vector<16x128xi32>
    %cst_30 = arith.constant 0.000000e+00 : f32
    %85 = vector.broadcast %cst_30 : f32 to vector<16x128xf32>
    %86 = arith.select %84, %85, %82 : vector<16x128xi1>, vector<16x128xf32>
    %c0_31 = arith.constant 0 : index
    %c0_32 = arith.constant 0 : index
    %87 = vector.load %arg4[%c0_31, %c0_32] : memref<16x128xf32, #tpu.memory_space<vmem>>, vector<16x128xf32>
    tpu.vector_store %arg4[%c0_31, %c0_32], %86 {strides = array<i32>} : memref<16x128xf32, #tpu.memory_space<vmem>>, vector<16x128xf32>,
    return
  }
}

</mosaic_0001>

<llo_original>
// kernel: tpu_custom_call.1
$region0: #{tpu_custom_call.1}
  #allocation0 [shape = 'u32[]', space=smem, size = 0x4, offset = 0x4, fixed_abs, tag = 'smem constant byte address 0x4 - core index']
  #allocation1 [shape = 'u32[72,128]{1,0:T(1,128)}', space=vmem, size = 0x9000, scoped, tag = 'internal scratch']
  %s0 = inlined_call_operand.vmem [shape: f32[16,16], index: 0, kind: input, shape index: {}]
  %s1 = inlined_call_operand.vmem [shape: f32[16,8], index: 1, kind: input, shape index: {}]
  %s2 = inlined_call_operand.vmem [shape: f32[8,16], index: 2, kind: input, shape index: {}]
  %s3 = inlined_call_operand.hbm [shape: f32[16,128], index: 3, kind: input, shape index: {}]
  %s4 = inlined_call_operand.hbm [shape: f32[16,128], index: 4, kind: output, shape index: {}]
  %s5 = sld [smem:[#allocation0]]
  $region30: #{tpu_custom_call.1} parent=0
    _
  %s7 = ssub.s32 1, %s5
  %s8 = scalar_select 0, %s7, %s5
  $region1: #{tpu_custom_call.1} parent=0
    #allocation2 [shape = 'u8[8192]{0}', space=vmem, size = 0x2000, scoped, tag = 'input window, operand 3, single buffered']
    #allocation3 [shape = 's32[1]{0}', space=sflag, size = 0x4, scoped, tag = 'scoped memory for tpu_custom_call.1']
    #allocation4 [shape = 's32[1]{0}', space=sflag, size = 0x4, scoped, tag = 'scoped memory for tpu_custom_call.1']
    #allocation5 [shape = 'u8[8192]{0}', space=vmem, size = 0x2000, scoped, tag = 'output window, operand 0, single buffered']
    %9 = vsyncpa [#allocation3], 0
    %10 = vsyncpa [#allocation4], 0
    // Predicated region
    $region2: #{tpu_custom_call.1} parent=1 // pred_check
      _
    $region3: #{tpu_custom_call.1} parent=1 // pred_check_branch
      %12 = sbr.rel (0) target = $region5
    $region4: #{tpu_custom_call.1} parent=1 // pred_region
      _
    $region5: #{tpu_custom_call.1} parent=1 // pred_fallthru
      _
    // Predicated region
    $region6: #{tpu_custom_call.1} parent=1 // pred_check
      _
    $region7: #{tpu_custom_call.1} parent=1 // pred_check_branch
      %14 = sbr.rel (0) target = $region9
    $region8: #{tpu_custom_call.1} parent=1 // pred_region
      _
    $region9: #{tpu_custom_call.1} parent=1 // pred_fallthru
      _
    // Predicated region
    $region10: #{tpu_custom_call.1} parent=1 // pred_check
      _
    $region11: #{tpu_custom_call.1} parent=1 // pred_check_branch
      %16 = sbr.rel (0) target = $region13
    $region12: #{tpu_custom_call.1} parent=1 // pred_region
      _
    $region13: #{tpu_custom_call.1} parent=1 // pred_fallthru
      _
    // Predicated region
    $region14: #{tpu_custom_call.1} parent=1 // pred_check
      _
    $region15: #{tpu_custom_call.1} parent=1 // pred_check_branch
      %18 = sbr.rel (0) target = $region17
    $region16: #{tpu_custom_call.1} parent=1 // pred_region
      %20 = vsyncadd [#allocation3], 0
      %s21 = sshll.u32 %s3, 4
      %s22 = int_to_ptr.hbm [resolvable:$true] %s21
      %s23 = sshll.u32 [#allocation2], 4
      %s24 = int_to_ptr.vmem [resolvable:$true] %s23
      %29 = dma.hbm_to_vmem [thread:$0]  %s22, 256, %s24, [#allocation3], 128, 128, 8
    $region17: #{tpu_custom_call.1} parent=1 // pred_fallthru
      _
    // Predicated region
    $region18: #{tpu_custom_call.1} parent=1 // pred_check
      _
    $region19: #{tpu_custom_call.1} parent=1 // pred_check_branch
      %31 = sbr.rel (0) target = $region21
    $region20: #{tpu_custom_call.1} parent=1 // pred_region
      %33 = dma.done [#allocation3], 256
    $region21: #{tpu_custom_call.1} parent=1 // pred_fallthru
      _
    %v34 = vld [vmem:[%s0] sm:$0xff]
    %v35 = vld [vmem:[%s0 + $0x8] sm:$0xff]
    %v36 = vld [vmem:[%s1] sm:$0xff]
    %v37 = vld [vmem:[%s1 + $0x8] sm:$0xff]
    %v38 = vld [vmem:[%s2] sm:$0xff]
    %vm39 = vcmask 64512
    %v41 = vsel %vm39, %v36, 0
    %v44 = vsel %vm39, %v37, 0
    %46 = vmatpush.msra.mxu0 0.0
    %47 = vmatpush.msra.mxu0 0.0
    %48 = vmatpush.msra.mxu0 0.0
    %49 = vmatpush.msra.mxu0 0.0
    %50 = vmatpush.msra.mxu0 0.0
    %51 = vmatpush.msra.mxu0 0.0
    %52 = vmatpush.msra.mxu0 0.0
    %53 = vmatpush.msra.mxu0 0.0
    %54 = vmatpush.msra.mxu0 0.0
    %55 = vmatpush.msra.mxu0 0.0
    %56 = vmatpush.msra.mxu0 0.0
    %57 = vmatpush.msra.mxu0 0.0
    %58 = vmatpush.msra.mxu0 0.0
    %59 = vmatpush.msra.mxu0 0.0
    %60 = vmatpush.msra.mxu0 0.0
    %61 = vmatpush.msra.mxu0 %v38
    %62 = vmatmul.f32.gmra.mxu0 %v41
    %v63 = vpop.f32.mrf.mxu0
    %v64 = vadd.f32 0.0, %v63
    %65 = vmatmul.f32.gmra.mxu0 %v44
    %v66 = vpop.f32.mrf.mxu0
    %v67 = vadd.f32 0.0, %v66
    %68 = vdwg.mxu0
    %vm69 = vcmask 130048
    %v71 = vsel %vm69, %v34, 0
    %v74 = vsel %vm69, %v35, 0
    %76 = vmatpush.msra.mxu0 0.0
    %77 = vmatpush.msra.mxu0 0.0
    %78 = vmatpush.msra.mxu0 0.0
    %79 = vmatpush.msra.mxu0 0.0
    %80 = vmatpush.msra.mxu0 0.0
    %81 = vmatpush.msra.mxu0 0.0
    %82 = vmatpush.msra.mxu0 0.0
    %83 = vmatpush.msra.mxu0 0.0
    %84 = vmatpush.msra.mxu0 0.0
    %85 = vmatpush.msra.mxu0 0.0
    %86 = vmatpush.msra.mxu0 0.0
    %87 = vmatpush.msra.mxu0 0.0
    %88 = vmatpush.msra.mxu0 0.0
    %89 = vmatpush.msra.mxu0 0.0
    %90 = vmatpush.msra.mxu0 %v67
    %91 = vmatpush.msra.mxu0 %v64
    %92 = vmatmul.f32.gmra.mxu0 %v71
    %v93 = vpop.f32.mrf.mxu0
    %v94 = vadd.f32 0.0, %v93
    %95 = vmatmul.f32.gmra.mxu0 %v74
    %v96 = vpop.f32.mrf.mxu0
    %v97 = vadd.f32 0.0, %v96
    %98 = vdwg.mxu0
    %v99 = vmax.f32 %v94, 0.0
    %v100 = vmax.f32 %v97, 0.0
    %v101 = vand.u32 2147483647, %v94
    %v102 = vand.u32 2147483647, %v97
    %v103 = vsub.f32 0.0, %v101
    %v104 = vsub.f32 0.0, %v102
    %v105 = vmul.f32 %v103, 1.442695
    %v106 = vpow.pop %v105
    %v107 = vmul.f32 %v104, 1.442695
    %v108 = vpow.pop %v107
    %v109 = vadd.f32 %v106, 1.0
    %v110 = vadd.f32 %v108, 1.0
    %v111 = vlog2.pop %v109
    %v112 = vmul.f32 %v111, 0.6931472
    %v113 = vlog2.pop %v110
    %v114 = vmul.f32 %v113, 0.6931472
    %v115 = vadd.f32 %v99, %v112
    %v116 = vadd.f32 %v100, %v114
    %v117 = vld [vmem:[#allocation2] sm:$0xff]
    %v118 = vld [vmem:[#allocation2 + $0x8] sm:$0xff]
    %v120 = vsel %vm69, %v115, 0
    %v123 = vsel %vm69, %v116, 0
    %125 = vmatpush.msra.mxu0 0.0
    %126 = vmatpush.msra.mxu0 0.0
    %127 = vmatpush.msra.mxu0 0.0
    %128 = vmatpush.msra.mxu0 0.0
    %129 = vmatpush.msra.mxu0 0.0
    %130 = vmatpush.msra.mxu0 0.0
    %131 = vmatpush.msra.mxu0 0.0
    %132 = vmatpush.msra.mxu0 0.0
    %133 = vmatpush.msra.mxu0 0.0
    %134 = vmatpush.msra.mxu0 0.0
    %135 = vmatpush.msra.mxu0 0.0
    %136 = vmatpush.msra.mxu0 0.0
    %137 = vmatpush.msra.mxu0 0.0
    %138 = vmatpush.msra.mxu0 0.0
    %139 = vmatpush.msra.mxu0 %v118
    %140 = vmatpush.msra.mxu0 %v117
    %141 = vmatmul.f32.gmra.mxu0 %v120
    %v142 = vpop.f32.mrf.mxu0
    %v143 = vadd.f32 0.0, %v142
    %144 = vmatmul.f32.gmra.mxu0 %v123
    %v145 = vpop.f32.mrf.mxu0
    %v146 = vadd.f32 0.0, %v145
    %147 = vdwg.mxu0
    %148 = vmatpush.msra.mxu0 0.0
    %149 = vmatpush.msra.mxu0 0.0
    %150 = vmatpush.msra.mxu0 0.0
    %151 = vmatpush.msra.mxu0 0.0
    %152 = vmatpush.msra.mxu0 0.0
    %153 = vmatpush.msra.mxu0 0.0
    %154 = vmatpush.msra.mxu0 0.0
    %155 = vmatpush.msra.mxu0 0.0
    %156 = vmatpush.msra.mxu0 0.0
    %157 = vmatpush.msra.mxu0 0.0
    %158 = vmatpush.msra.mxu0 0.0
    %159 = vmatpush.msra.mxu0 0.0
    %160 = vmatpush.msra.mxu0 0.0
    %161 = vmatpush.msra.mxu0 0.0
    %162 = vmatpush.msra.mxu0 %v146
    %163 = vmatpush.msra.mxu0 %v143
    %164 = vmatmul.f32.gmra.mxu0 %v71
    %v165 = vpop.f32.mrf.mxu0
    %v166 = vadd.f32 0.0, %v165
    %167 = vmatmul.f32.gmra.mxu0 %v74
    %v168 = vpop.f32.mrf.mxu0
    %v169 = vadd.f32 0.0, %v168
    %170 = vdwg.mxu0
    %v171 = vmax.f32 %v166, 0.0
    %v172 = vmax.f32 %v169, 0.0
    %v173 = vand.u32 2147483647, %v166
    %v174 = vand.u32 2147483647, %v169
    %v175 = vsub.f32 0.0, %v173
    %v176 = vsub.f32 0.0, %v174
    %v177 = vmul.f32 %v175, 1.442695
    %v178 = vpow.pop %v177
    %v179 = vmul.f32 %v176, 1.442695
    %v180 = vpow.pop %v179
    %v181 = vadd.f32 %v178, 1.0
    %v182 = vadd.f32 %v180, 1.0
    %v183 = vlog2.pop %v181
    %v184 = vmul.f32 %v183, 0.6931472
    %v185 = vlog2.pop %v182
    %v186 = vmul.f32 %v185, 0.6931472
    %v187 = vadd.f32 %v171, %v184
    %v188 = vadd.f32 %v172, %v186
    %v189 = vadd.f32 %v187, 0.1
    %v190 = vadd.f32 %v188, 0.1
    %v191 = vrcp.pop %v189
    %v192 = vmul.f32 %v189, %v191
    %v193 = vsub.f32 1.0, %v192
    %v194 = vmul.f32 %v191, %v193
    %v195 = vadd.f32 %v191, %v194
    %vm196 = vweird.f32 %v189
    %vm197 = vweird.f32 %v191
    %vm198 = vmor %vm196, %vm197
    %v199 = vsel %vm198, %v191, %v195
    %v200 = vand.u32 2147483647, %v189
    %vm201 = vcmp.eq.f32.partialorder %v200, 8.507059e+37
    %v202 = vand.u32 %v189, 2147483648
    %v203 = vor.u32 1.1754944e-38, %v202
    %v204 = vsel %vm201, %v203, %v199
    %v205 = vrcp.pop %v190
    %v206 = vmul.f32 %v190, %v205
    %v207 = vsub.f32 1.0, %v206
    %v208 = vmul.f32 %v205, %v207
    %v209 = vadd.f32 %v205, %v208
    %vm210 = vweird.f32 %v190
    %vm211 = vweird.f32 %v205
    %vm212 = vmor %vm210, %vm211
    %v213 = vsel %vm212, %v205, %v209
    %v214 = vand.u32 2147483647, %v190
    %vm215 = vcmp.eq.f32.partialorder %v214, 8.507059e+37
    %v216 = vand.u32 %v190, 2147483648
    %v217 = vor.u32 1.1754944e-38, %v216
    %v218 = vsel %vm215, %v217, %v213
    %v219 = vadd.f32 %v204, 1.0
    %v220 = vadd.f32 %v218, 1.0
    %v221 = vadd.f32 %v219, 6.0
    %v222 = vadd.f32 %v220, 6.0
    %v223 = vadd.f32 %v219, 1.0
    %v224 = vadd.f32 %v220, 1.0
    %v225 = vmul.f32 %v219, %v223
    %v226 = vmul.f32 %v220, %v224
    %v227 = vadd.f32 %v219, 2.0
    %v228 = vadd.f32 %v220, 2.0
    %v229 = vmul.f32 %v225, %v227
    %v230 = vmul.f32 %v226, %v228
    %v231 = vadd.f32 %v219, 3.0
    %v232 = vadd.f32 %v220, 3.0
    %v233 = vmul.f32 %v229, %v231
    %v234 = vmul.f32 %v230, %v232
    %v235 = vadd.f32 %v219, 4.0
    %v236 = vadd.f32 %v220, 4.0
    %v237 = vmul.f32 %v233, %v235
    %v238 = vmul.f32 %v234, %v236
    %v239 = vadd.f32 %v219, 5.0
    %v240 = vadd.f32 %v220, 5.0
    %v241 = vmul.f32 %v237, %v239
    %v242 = vmul.f32 %v238, %v240
    %v243 = vrcp.pop %v221
    %v244 = vrcp.pop %v222
    %v245 = vmul.f32 %v243, %v243
    %v246 = vmul.f32 %v244, %v244
    %v247 = vmul.f32 %v245, 0.0007936508
    %v248 = vmul.f32 %v246, 0.0007936508
    %v249 = vsub.f32 0.0027777778, %v247
    %v250 = vsub.f32 0.0027777778, %v248
    %v251 = vmul.f32 %v245, %v249
    %v252 = vmul.f32 %v246, %v250
    %v253 = vsub.f32 0.083333336, %v251
    %v254 = vsub.f32 0.083333336, %v252
    %v255 = vmul.f32 %v243, %v253
    %v256 = vmul.f32 %v244, %v254
    %v257 = vsub.f32 %v221, 0.5
    %v258 = vsub.f32 %v222, 0.5
    %v259 = vlog2.pop %v221
    %v260 = vmul.f32 %v259, 0.6931472
    %v261 = vlog2.pop %v222
    %v262 = vmul.f32 %v261, 0.6931472
    %v263 = vmul.f32 %v257, %v260
    %v264 = vmul.f32 %v258, %v262
    %v265 = vsub.f32 %v263, %v221
    %v266 = vsub.f32 %v264, %v222
    %v267 = vadd.f32 %v265, 0.9189385
    %v268 = vadd.f32 %v266, 0.9189385
    %v269 = vadd.f32 %v267, %v255
    %v270 = vadd.f32 %v268, %v256
    %v271 = vmul.f32 %v269, 1.442695
    %v272 = vpow.pop %v271
    %v273 = vmul.f32 %v270, 1.442695
    %v274 = vpow.pop %v273
    %v275 = vrcp.pop %v241
    %v276 = vmul.f32 %v241, %v275
    %v277 = vsub.f32 1.0, %v276
    %v278 = vmul.f32 %v275, %v277
    %v279 = vadd.f32 %v275, %v278
    %vm280 = vweird.f32 %v241
    %vm281 = vweird.f32 %v275
    %vm282 = vmor %vm280, %vm281
    %v283 = vsel %vm282, %v275, %v279
    %v284 = vand.u32 2147483647, %v241
    %vm285 = vcmp.eq.f32.partialorder %v284, 8.507059e+37
    %v286 = vand.u32 %v241, 2147483648
    %v287 = vor.u32 1.1754944e-38, %v286
    %v288 = vsel %vm285, %v287, %v283
    %v289 = vrcp.pop %v242
    %v290 = vmul.f32 %v242, %v289
    %v291 = vsub.f32 1.0, %v290
    %v292 = vmul.f32 %v289, %v291
    %v293 = vadd.f32 %v289, %v292
    %vm294 = vweird.f32 %v242
    %vm295 = vweird.f32 %v289
    %vm296 = vmor %vm294, %vm295
    %v297 = vsel %vm296, %v289, %v293
    %v298 = vand.u32 2147483647, %v242
    %vm299 = vcmp.eq.f32.partialorder %v298, 8.507059e+37
    %v300 = vand.u32 %v242, 2147483648
    %v301 = vor.u32 1.1754944e-38, %v300
    %v302 = vsel %vm299, %v301, %v297
    %v303 = vmul.f32 %v272, %v288
    %v304 = vmul.f32 %v274, %v302
    %v305 = vlaneseq
    %v306 = vand.u32 %v305, 127
    %vm307 = vcmp.lt.s32.totalorder %v306, 8
    %309 = vset.pattern.permute.xlu0 16
    %310 = vperm.xlu0 %309, %v303
    %v311 = vpop.permute.xlu0 %310
    %314 = vset.pattern.permute.xlu0 16
    %315 = vperm.xlu0 %314, %v304
    %v316 = vpop.permute.xlu0 %315
    %v318 = vmul.f32 %v187, %v311
    %v319 = vmul.f32 %v188, %v316
    %v320 = vsel %vm307, %v318, %v187
    %v321 = vsel %vm307, %v319, %v188
    %vm322 = vcmp.eq.s32.totalorder %v306, 16
    %v323 = vsel %vm322, %v189, %v320
    %v324 = vsel %vm322, %v190, %v321
    %vm325 = vcmp.ge.s32.totalorder %v306, 17
    %v326 = vsel %vm325, 0.0, %v323
    %v327 = vsel %vm325, 0.0, %v324
    %328 = vst [vmem:[#allocation5] sm:$0xff] %v326
    %329 = vst [vmem:[#allocation5 + $0x8] sm:$0xff] %v327
    // Predicated region
    $region22: #{tpu_custom_call.1} parent=1 // pred_check
      _
    $region23: #{tpu_custom_call.1} parent=1 // pred_check_branch
      %331 = sbr.rel (0) target = $region25
    $region24: #{tpu_custom_call.1} parent=1 // pred_region
      %333 = vsyncadd [#allocation4], 0
      %s334 = sshll.u32 [#allocation5], 4
      %s335 = int_to_ptr.vmem [resolvable:$true] %s334
      %s336 = sshll.u32 %s4, 4
      %s337 = int_to_ptr.hbm [resolvable:$true] %s336
      %342 = dma.vmem_to_hbm [thread:$0]  %s335, 256, %s337, [#allocation4], 128, 128, 8
    $region25: #{tpu_custom_call.1} parent=1 // pred_fallthru
      _
    // Predicated region
    $region26: #{tpu_custom_call.1} parent=1 // pred_check
      _
    $region27: #{tpu_custom_call.1} parent=1 // pred_check_branch
      %344 = sbr.rel (0) target = $region29
    $region28: #{tpu_custom_call.1} parent=1 // pred_region
      %346 = dma.done [#allocation4], 256
    $region29: #{tpu_custom_call.1} parent=1 // pred_fallthru
      _
    %347 = vsyncpa [#allocation3], 1
    %348 = vsyncpa [#allocation4], 1

</llo_original>
